<compile_context>
chip_gen: v5e
topology: v5e:2x2
jax: 0.10.0
libtpu: 0.0.40
codegen_flags: <defaults>
</compile_context>

<pallas_src>
import jax
import jax.numpy as jnp
from jax.experimental import pallas as pl
from jax.experimental.pallas import tpu as pltpu

NEG_SLOPE = 0.01  # nn.LeakyReLU default negative_slope


def _round_up(n, m):
    return ((n + m - 1) // m) * m


def _leaky_relu(v):
    return jnp.where(v >= 0, v, NEG_SLOPE * v)


def branchnet_kernel(x_ref, w_in_ref, b_in_ref, w_h_ref, b_h_ref,
                     w_out_ref, b_out_ref, out_ref):
    """One batch tile: 3 f32 matmuls + LeakyReLU + residual + bias adds."""
    x = x_ref[...]

    # input_layer + activation
    h = jnp.dot(x, w_in_ref[...], preferred_element_type=jnp.float32)
    h = _leaky_relu(h + b_in_ref[...])

    x_in = h                                    # torch.clone(x)

    # single hidden layer + activation (hidden_neurons=[8,8,8] -> one layer)
    h2 = jnp.dot(h, w_h_ref[...], preferred_element_type=jnp.float32)
    h2 = _leaky_relu(h2 + b_h_ref[...])

    # residual add
    h2 = h2 + x_in

    # output_layer: (tb, 100) block — last dim == full array dim, masked
    # stores are fine (kernel is HBM-bound, not store-slot-bound).
    y = jnp.dot(h2, w_out_ref[...], preferred_element_type=jnp.float32)
    out_ref[...] = (y + b_out_ref[...]).astype(out_ref.dtype)


def _choose_tiling(B, batch_tile):
    """Pick (tb, b_grid): tb multiple of 8, b_grid = tb * num_steps >= B.

    Prefers divisor-aware tiling (b_grid == round_up(B, 8), no x pad / y row
    slice) and >= 2 grid steps so both v7x TensorCores get work.
    """
    b8 = _round_up(B, 8)
    if b8 <= batch_tile:
        # Whole batch fits in one pallas_call; split into 2 tiles when the
        # tile count allows so the "parallel" grid axis feeds both TCs.
        if b8 >= 16 and (b8 // 8) % 2 == 0:
            return b8 // 2, b8
        return b8, b8
    # Large batch: largest multiple-of-8 divisor of b8 that is <= batch_tile.
    n8 = b8 // 8
    best = 8
    d = 1
    while d * d <= n8:
        if n8 % d == 0:
            for t in (d, n8 // d):
                tb = t * 8
                if tb <= batch_tile and tb > best:
                    best = tb
        d += 1
    if best >= batch_tile // 2:
        return best, b8            # divisor-aware: no row padding needed
    # Poor divisor structure: pad rows up to a multiple of batch_tile instead.
    return batch_tile, _round_up(b8, batch_tile)


def branchnet_forward(x, params, *, batch_tile=4096, out_dtype=jnp.float32):
    """x: (B, hidden_neurons[0]) f32.  params: (in,out) weights / (1,out) biases.

    out_dtype=jnp.bfloat16 halves the dominant output HBM write (~1.6-1.9x
    kernel speedup) but deviates from the f32 PyTorch module; default is f32.
    """
    B, in_dim = x.shape
    out_size = params["w_out"].shape[1]

    w_in = params["w_in"].astype(jnp.float32)
    b_in = params["b_in"].astype(jnp.float32)
    w_h = params["w_h"].astype(jnp.float32)
    b_h = params["b_h"].astype(jnp.float32)
    w_out = params["w_out"].astype(jnp.float32)
    b_out = params["b_out"].astype(jnp.float32)

    tb, b_grid = _choose_tiling(B, batch_tile)
    if b_grid != B:
        x = jnp.pad(x, ((0, b_grid - B), (0, 0)))
    grid = (b_grid // tb,)

    resident = lambda a: pl.BlockSpec(a.shape, lambda i: (0, 0))   # stays in VMEM
    in_specs = [
        pl.BlockSpec((tb, in_dim), lambda i: (i, 0)),              # x tile
        resident(w_in), resident(b_in),
        resident(w_h), resident(b_h),
        resident(w_out), resident(b_out),
    ]
    out_spec = pl.BlockSpec((tb, out_size), lambda i: (i, 0))

    # VMEM budget with lane padding: each (tb, <=128) f32 tensor occupies
    # tb*128*4 bytes.  2 x-buffers + 2 out-buffers + ~4 in-body temporaries.
    lane_row = tb * 128 * 4
    vmem_est = 8 * lane_row
    vmem_limit = int(min(48 << 20, max(32 << 20, int(1.5 * vmem_est))))

    h0, h1 = params["w_in"].shape
    h2 = params["w_h"].shape[1]
    out_bytes = jnp.dtype(out_dtype).itemsize
    flops = 2 * b_grid * (h0 * h1 + h1 * h2 + h2 * out_size)
    bytes_accessed = (b_grid * in_dim * 4 + b_grid * out_size * out_bytes
                      + (h0 * h1 + h1 * h2 + h2 * out_size) * 4
                      + (h1 + h2 + out_size) * 4)

    y = pl.pallas_call(
        branchnet_kernel,
        out_shape=jax.ShapeDtypeStruct((b_grid, out_size), out_dtype),
        grid_spec=pltpu.PrefetchScalarGridSpec(
            num_scalar_prefetch=0,
            grid=grid,
            in_specs=in_specs,
            out_specs=out_spec,
        ),
        compiler_params=pltpu.CompilerParams(
            dimension_semantics=("parallel",),
            vmem_limit_bytes=vmem_limit),
        cost_estimate=pl.CostEstimate(flops=flops, transcendentals=0,
                                      bytes_accessed=bytes_accessed),
    )(x, w_in, b_in, w_h, b_h, w_out, b_out)

    if b_grid != B:
        y = y[:B]
    return y


def init_params(key, hidden_neurons=(8, 8, 8), output_size=100):
    """Deterministic synthetic parameters (shapes match the nn.Linear layers)."""
    k = jax.random.split(key, 6)
    h0, h1, h2 = hidden_neurons
    scale = 0.1
    return {
        "w_in":  scale * jax.random.normal(k[0], (h0, h1), jnp.float32),
        "b_in":  scale * jax.random.normal(k[1], (1, h1), jnp.float32),
        "w_h":   scale * jax.random.normal(k[2], (h1, h2), jnp.float32),
        "b_h":   scale * jax.random.normal(k[3], (1, h2), jnp.float32),
        "w_out": scale * jax.random.normal(k[4], (h2, output_size), jnp.float32),
        "b_out": scale * jax.random.normal(k[5], (1, output_size), jnp.float32),
    }


def reference_forward(x, p):
    """Pure-JAX f32 reference mirroring the PyTorch module."""
    h = _leaky_relu(jnp.dot(x, p["w_in"]) + p["b_in"])
    x_in = h
    h = _leaky_relu(jnp.dot(h, p["w_h"]) + p["b_h"])
    h = h + x_in
    return jnp.dot(h, p["w_out"]) + p["b_out"]


if __name__ == "__main__":
    key = jax.random.PRNGKey(0)
    kx, kx2, kp = jax.random.split(key, 3)

    hidden_neurons = (8, 8, 8)
    output_size = 100
    params = init_params(kp, hidden_neurons, output_size)

    # Case 1: small batch, multiple of 8 -> single grid step, no pad/slice.
    x1 = jax.random.normal(kx, (8, hidden_neurons[0]), jnp.float32)
    out1 = jax.block_until_ready(branchnet_forward(x1, params))
    assert out1.shape == (8, output_size)
    ref1 = reference_forward(x1, params)
    assert jnp.allclose(out1, ref1, atol=1e-4, rtol=1e-4), \
        "mismatch vs f32 JAX reference (case 1)"

    # Case 2: batch not a multiple of 8 -> exercises row padding + row slice.
    x2 = jax.random.normal(kx2, (20, hidden_neurons[0]), jnp.float32)
    out2 = jax.block_until_ready(branchnet_forward(x2, params))
    assert out2.shape == (20, output_size)
    ref2 = reference_forward(x2, params)
    assert jnp.allclose(out2, ref2, atol=1e-4, rtol=1e-4), \
        "mismatch vs f32 JAX reference (case 2)"

    print("KERNEL_OK")
</pallas_src>

<mosaic_0001>
module attributes {stable_mosaic.version = 11 : i64} {
  func.func @branchnet_kernel(%arg0: i32, %arg1: memref<8x8xf32, #tpu.memory_space<vmem>>, %arg2: memref<8x8xf32, #tpu.memory_space<vmem>>, %arg3: memref<1x8xf32, #tpu.memory_space<vmem>>, %arg4: memref<8x8xf32, #tpu.memory_space<vmem>>, %arg5: memref<1x8xf32, #tpu.memory_space<vmem>>, %arg6: memref<8x100xf32, #tpu.memory_space<vmem>>, %arg7: memref<1x100xf32, #tpu.memory_space<vmem>>, %arg8: memref<8x100xf32, #tpu.memory_space<vmem>>) attributes {dimension_semantics = [#tpu.dimension_semantics<parallel>], iteration_bounds = array<i64: 1>, scalar_prefetch = 0 : i64, scratch_operands = 0 : i64, tpu.core_type = #tpu.core_type<tc>, window_params = [{transform_indices = @transform_0, window_bounds = array<i64: 8, 8>}, {pipeline_mode = #tpu.pipeline_mode<synchronous>, transform_indices = @transform_1, window_bounds = array<i64: 8, 8>}, {pipeline_mode = #tpu.pipeline_mode<synchronous>, transform_indices = @transform_2, window_bounds = array<i64: 1, 8>}, {pipeline_mode = #tpu.pipeline_mode<synchronous>, transform_indices = @transform_3, window_bounds = array<i64: 8, 8>}, {pipeline_mode = #tpu.pipeline_mode<synchronous>, transform_indices = @transform_4, window_bounds = array<i64: 1, 8>}, {pipeline_mode = #tpu.pipeline_mode<synchronous>, transform_indices = @transform_5, window_bounds = array<i64: 8, 100>}, {pipeline_mode = #tpu.pipeline_mode<synchronous>, transform_indices = @transform_6, window_bounds = array<i64: 1, 100>}, {transform_indices = @transform_7, window_bounds = array<i64: 8, 100>}]} {
    %c0 = arith.constant 0 : index
    %c0_0 = arith.constant 0 : index
    %0 = vector.load %arg1[%c0, %c0_0] : memref<8x8xf32, #tpu.memory_space<vmem>>, vector<8x8xf32>
    %c0_1 = arith.constant 0 : index
    %c0_2 = arith.constant 0 : index
    %1 = vector.load %arg2[%c0_1, %c0_2] : memref<8x8xf32, #tpu.memory_space<vmem>>, vector<8x8xf32>
    %cst = arith.constant dense<0.000000e+00> : vector<8x8xf32>
    %2 = tpu.matmul %0, %1, %cst {dimension_numbers = #tpu.dot_dimension_numbers<[1], [0], [0], [1], [0, 0, 1, 1], [], []>} : vector<8x8xf32>, vector<8x8xf32>, vector<8x8xf32> -> vector<8x8xf32>
    %c0_3 = arith.constant 0 : index
    %c0_4 = arith.constant 0 : index
    %3 = vector.load %arg3[%c0_3, %c0_4] : memref<1x8xf32, #tpu.memory_space<vmem>>, vector<1x8xf32>
    %4 = vector.broadcast %3 : vector<1x8xf32> to vector<8x8xf32>
    %5 = arith.addf %2, %4 : vector<8x8xf32>
    %cst_5 = arith.constant 0.000000e+00 : f32
    %6 = vector.broadcast %cst_5 : f32 to vector<8x8xf32>
    %7 = arith.cmpf oge, %5, %6 : vector<8x8xf32>
    %cst_6 = arith.constant 0.00999999977 : f32
    %8 = vector.broadcast %cst_6 : f32 to vector<8x8xf32>
    %9 = arith.mulf %8, %5 : vector<8x8xf32>
    %10 = arith.select %7, %5, %9 : vector<8x8xi1>, vector<8x8xf32>
    %c0_7 = arith.constant 0 : index
    %c0_8 = arith.constant 0 : index
    %11 = vector.load %arg4[%c0_7, %c0_8] : memref<8x8xf32, #tpu.memory_space<vmem>>, vector<8x8xf32>
    %cst_9 = arith.constant dense<0.000000e+00> : vector<8x8xf32>
    %12 = tpu.matmul %10, %11, %cst_9 {dimension_numbers = #tpu.dot_dimension_numbers<[1], [0], [0], [1], [0, 0, 1, 1], [], []>} : vector<8x8xf32>, vector<8x8xf32>, vector<8x8xf32> -> vector<8x8xf32>
    %c0_10 = arith.constant 0 : index
    %c0_11 = arith.constant 0 : index
    %13 = vector.load %arg5[%c0_10, %c0_11] : memref<1x8xf32, #tpu.memory_space<vmem>>, vector<1x8xf32>
    %14 = vector.broadcast %13 : vector<1x8xf32> to vector<8x8xf32>
    %15 = arith.addf %12, %14 : vector<8x8xf32>
    %cst_12 = arith.constant 0.000000e+00 : f32
    %16 = vector.broadcast %cst_12 : f32 to vector<8x8xf32>
    %17 = arith.cmpf oge, %15, %16 : vector<8x8xf32>
    %cst_13 = arith.constant 0.00999999977 : f32
    %18 = vector.broadcast %cst_13 : f32 to vector<8x8xf32>
    %19 = arith.mulf %18, %15 : vector<8x8xf32>
    %20 = arith.select %17, %15, %19 : vector<8x8xi1>, vector<8x8xf32>
    %21 = arith.addf %20, %10 : vector<8x8xf32>
    %c0_14 = arith.constant 0 : index
    %c0_15 = arith.constant 0 : index
    %22 = vector.load %arg6[%c0_14, %c0_15] : memref<8x100xf32, #tpu.memory_space<vmem>>, vector<8x100xf32>
    %cst_16 = arith.constant dense<0.000000e+00> : vector<8x100xf32>
    %23 = tpu.matmul %21, %22, %cst_16 {dimension_numbers = #tpu.dot_dimension_numbers<[1], [0], [0], [1], [0, 0, 1, 1], [], []>} : vector<8x8xf32>, vector<8x100xf32>, vector<8x100xf32> -> vector<8x100xf32>
    %c0_17 = arith.constant 0 : index
    %c0_18 = arith.constant 0 : index
    %24 = vector.load %arg7[%c0_17, %c0_18] : memref<1x100xf32, #tpu.memory_space<vmem>>, vector<1x100xf32>
    %25 = vector.broadcast %24 : vector<1x100xf32> to vector<8x100xf32>
    %26 = arith.addf %23, %25 : vector<8x100xf32>
    %c0_19 = arith.constant 0 : index
    %c0_20 = arith.constant 0 : index
    %27 = vector.load %arg8[%c0_19, %c0_20] : memref<8x100xf32, #tpu.memory_space<vmem>>, vector<8x100xf32>
    tpu.vector_store %arg8[%c0_19, %c0_20], %26 {strides = array<i32>} : memref<8x100xf32, #tpu.memory_space<vmem>>, vector<8x100xf32>,
    return
  }
  func.func @transform_0(%arg0: i32) -> (i32, i32) {
    %c0_i32 = arith.constant 0 : i32
    %c0_i32_0 = arith.constant 0 : i32
    return %arg0, %c0_i32 : i32, i32
  }
  func.func @transform_1(%arg0: i32) -> (i32, i32) {
    %c0_i32 = arith.constant 0 : i32
    %c0_i32_0 = arith.constant 0 : i32
    %c0_i32_1 = arith.constant 0 : i32
    return %c0_i32, %c0_i32_0 : i32, i32
  }
  func.func @transform_2(%arg0: i32) -> (i32, i32) {
    %c0_i32 = arith.constant 0 : i32
    %c0_i32_0 = arith.constant 0 : i32
    %c0_i32_1 = arith.constant 0 : i32
    return %c0_i32, %c0_i32_0 : i32, i32
  }
  func.func @transform_3(%arg0: i32) -> (i32, i32) {
    %c0_i32 = arith.constant 0 : i32
    %c0_i32_0 = arith.constant 0 : i32
    %c0_i32_1 = arith.constant 0 : i32
    return %c0_i32, %c0_i32_0 : i32, i32
  }
  func.func @transform_4(%arg0: i32) -> (i32, i32) {
    %c0_i32 = arith.constant 0 : i32
    %c0_i32_0 = arith.constant 0 : i32
    %c0_i32_1 = arith.constant 0 : i32
    return %c0_i32, %c0_i32_0 : i32, i32
  }
  func.func @transform_5(%arg0: i32) -> (i32, i32) {
    %c0_i32 = arith.constant 0 : i32
    %c0_i32_0 = arith.constant 0 : i32
    %c0_i32_1 = arith.constant 0 : i32
    return %c0_i32, %c0_i32_0 : i32, i32
  }
  func.func @transform_6(%arg0: i32) -> (i32, i32) {
    %c0_i32 = arith.constant 0 : i32
    %c0_i32_0 = arith.constant 0 : i32
    %c0_i32_1 = arith.constant 0 : i32
    return %c0_i32, %c0_i32_0 : i32, i32
  }
  func.func @transform_7(%arg0: i32) -> (i32, i32) {
    %c0_i32 = arith.constant 0 : i32
    %c0_i32_0 = arith.constant 0 : i32
    return %arg0, %c0_i32 : i32, i32
  }
}

</mosaic_0001>

<llo_original>
// kernel: tpu_custom_call.1
$region0: #{tpu_custom_call.1}
  #allocation0 [shape = 'u32[]', space=smem, size = 0x4, offset = 0x4, fixed_abs, tag = 'smem constant byte address 0x4 - core index']
  #allocation1 [shape = 'u32[72,128]{1,0:T(1,128)}', space=vmem, size = 0x9000, scoped, tag = 'internal scratch']
  %s0 = inlined_call_operand.hbm [shape: f32[8,8], index: 0, kind: input, shape index: {}]
  %s1 = inlined_call_operand.hbm [shape: f32[8,8], index: 1, kind: input, shape index: {}]
  %s2 = inlined_call_operand.vmem [shape: f32[1,8], index: 2, kind: input, shape index: {}]
  %s3 = inlined_call_operand.hbm [shape: f32[8,8], index: 3, kind: input, shape index: {}]
  %s4 = inlined_call_operand.vmem [shape: f32[1,8], index: 4, kind: input, shape index: {}]
  %s5 = inlined_call_operand.hbm [shape: f32[8,100], index: 5, kind: input, shape index: {}]
  %s6 = inlined_call_operand.vmem [shape: f32[1,100], index: 6, kind: input, shape index: {}]
  %s7 = inlined_call_operand.hbm [shape: f32[8,100], index: 7, kind: output, shape index: {}]
  %s8 = sld [smem:[#allocation0]]
  $region54: #{tpu_custom_call.1} parent=0
    _
  %s10 = ssub.s32 1, %s8
  %s11 = scalar_select 0, %s10, %s8
  $region1: #{tpu_custom_call.1} parent=0
    #allocation2 [shape = 'u8[4096]{0}', space=vmem, size = 0x1000, scoped, tag = 'input window, operand 0, single buffered']
    #allocation3 [shape = 's32[1]{0}', space=sflag, size = 0x4, scoped, tag = 'scoped memory for tpu_custom_call.1']
    #allocation4 [shape = 's32[1]{0}', space=sflag, size = 0x4, scoped, tag = 'scoped memory for tpu_custom_call.1']
    #allocation5 [shape = 'u8[4096]{0}', space=vmem, size = 0x1000, scoped, tag = 'input window, operand 1, single buffered']
    #allocation6 [shape = 's32[1]{0}', space=sflag, size = 0x4, scoped, tag = 'scoped memory for tpu_custom_call.1']
    #allocation7 [shape = 'u8[4096]{0}', space=vmem, size = 0x1000, scoped, tag = 'input window, operand 3, single buffered']
    #allocation8 [shape = 'u8[4096]{0}', space=vmem, size = 0x1000, scoped, tag = 'input window, operand 5, single buffered']
    #allocation9 [shape = 's32[1]{0}', space=sflag, size = 0x4, scoped, tag = 'scoped memory for tpu_custom_call.1']
    #allocation10 [shape = 'u8[4096]{0}', space=vmem, size = 0x1000, scoped, tag = 'output window, operand 0, single buffered']
    %12 = vsyncpa [#allocation3], 0
    %13 = vsyncpa [#allocation6], 0
    %14 = vsyncpa [#allocation9], 0
    %15 = vsyncpa [#allocation4], 0
    // Predicated region
    $region2: #{tpu_custom_call.1} parent=1 // pred_check
      _
    $region3: #{tpu_custom_call.1} parent=1 // pred_check_branch
      %17 = sbr.rel (0) target = $region5
    $region4: #{tpu_custom_call.1} parent=1 // pred_region
      %19 = vsyncadd [#allocation3], 0
      %s21 = sshll.u32 %s0, 4
      %s22 = int_to_ptr.hbm [resolvable:$true] %s21
      %s23 = sshll.u32 [#allocation2], 4
      %s24 = int_to_ptr.vmem [resolvable:$true] %s23
      %26 = dma.hbm_to_vmem [thread:$0]  %s22, 128, %s24, [#allocation3]
    $region5: #{tpu_custom_call.1} parent=1 // pred_fallthru
      _
    // Predicated region
    $region6: #{tpu_custom_call.1} parent=1 // pred_check
      _
    $region7: #{tpu_custom_call.1} parent=1 // pred_check_branch
      %28 = sbr.rel (0) target = $region9
    $region8: #{tpu_custom_call.1} parent=1 // pred_region
      %30 = vsyncadd [#allocation6], 0
      %s32 = sshll.u32 %s1, 4
      %s33 = int_to_ptr.hbm [resolvable:$true] %s32
      %s34 = sshll.u32 [#allocation5], 4
      %s35 = int_to_ptr.vmem [resolvable:$true] %s34
      %37 = dma.hbm_to_vmem [thread:$0]  %s33, 128, %s35, [#allocation6]
    $region9: #{tpu_custom_call.1} parent=1 // pred_fallthru
      _
    // Predicated region
    $region10: #{tpu_custom_call.1} parent=1 // pred_check
      _
    $region11: #{tpu_custom_call.1} parent=1 // pred_check_branch
      %39 = sbr.rel (0) target = $region13
    $region12: #{tpu_custom_call.1} parent=1 // pred_region
      _
    $region13: #{tpu_custom_call.1} parent=1 // pred_fallthru
      _
    // Predicated region
    $region14: #{tpu_custom_call.1} parent=1 // pred_check
      _
    $region15: #{tpu_custom_call.1} parent=1 // pred_check_branch
      %41 = sbr.rel (0) target = $region17
    $region16: #{tpu_custom_call.1} parent=1 // pred_region
      %43 = vsyncadd [#allocation6], 0
      %s45 = sshll.u32 %s3, 4
      %s46 = int_to_ptr.hbm [resolvable:$true] %s45
      %s47 = sshll.u32 [#allocation7], 4
      %s48 = int_to_ptr.vmem [resolvable:$true] %s47
      %50 = dma.hbm_to_vmem [thread:$0]  %s46, 128, %s48, [#allocation6]
    $region17: #{tpu_custom_call.1} parent=1 // pred_fallthru
      _
    // Predicated region
    $region18: #{tpu_custom_call.1} parent=1 // pred_check
      _
    $region19: #{tpu_custom_call.1} parent=1 // pred_check_branch
      %52 = sbr.rel (0) target = $region21
    $region20: #{tpu_custom_call.1} parent=1 // pred_region
      _
    $region21: #{tpu_custom_call.1} parent=1 // pred_fallthru
      _
    // Predicated region
    $region22: #{tpu_custom_call.1} parent=1 // pred_check
      _
    $region23: #{tpu_custom_call.1} parent=1 // pred_check_branch
      %54 = sbr.rel (0) target = $region25
    $region24: #{tpu_custom_call.1} parent=1 // pred_region
      %56 = vsyncadd [#allocation9], 0
      %s58 = sshll.u32 %s5, 4
      %s59 = int_to_ptr.hbm [resolvable:$true] %s58
      %s60 = sshll.u32 [#allocation8], 4
      %s61 = int_to_ptr.vmem [resolvable:$true] %s60
      %63 = dma.hbm_to_vmem [thread:$0]  %s59, 128, %s61, [#allocation9]
    $region25: #{tpu_custom_call.1} parent=1 // pred_fallthru
      _
    // Predicated region
    $region26: #{tpu_custom_call.1} parent=1 // pred_check
      _
    $region27: #{tpu_custom_call.1} parent=1 // pred_check_branch
      %65 = sbr.rel (0) target = $region29
    $region28: #{tpu_custom_call.1} parent=1 // pred_region
      _
    $region29: #{tpu_custom_call.1} parent=1 // pred_fallthru
      _
    // Predicated region
    $region30: #{tpu_custom_call.1} parent=1 // pred_check
      _
    $region31: #{tpu_custom_call.1} parent=1 // pred_check_branch
      %67 = sbr.rel (0) target = $region33
    $region32: #{tpu_custom_call.1} parent=1 // pred_region
      %69 = dma.done [#allocation3], 128
    $region33: #{tpu_custom_call.1} parent=1 // pred_fallthru
      _
    // Predicated region
    $region34: #{tpu_custom_call.1} parent=1 // pred_check
      _
    $region35: #{tpu_custom_call.1} parent=1 // pred_check_branch
      %71 = sbr.rel (0) target = $region37
    $region36: #{tpu_custom_call.1} parent=1 // pred_region
      %73 = dma.done [#allocation6], 128
    $region37: #{tpu_custom_call.1} parent=1 // pred_fallthru
      _
    // Predicated region
    $region38: #{tpu_custom_call.1} parent=1 // pred_check
      _
    $region39: #{tpu_custom_call.1} parent=1 // pred_check_branch
      %75 = sbr.rel (0) target = $region41
    $region40: #{tpu_custom_call.1} parent=1 // pred_region
      %77 = dma.done [#allocation6], 128
    $region41: #{tpu_custom_call.1} parent=1 // pred_fallthru
      _
    // Predicated region
    $region42: #{tpu_custom_call.1} parent=1 // pred_check
      _
    $region43: #{tpu_custom_call.1} parent=1 // pred_check_branch
      %79 = sbr.rel (0) target = $region45
    $region44: #{tpu_custom_call.1} parent=1 // pred_region
      %81 = dma.done [#allocation9], 128
    $region45: #{tpu_custom_call.1} parent=1 // pred_fallthru
      _
    %v82 = vld [vmem:[#allocation2] sm:$0xff]
    %v83 = vld [vmem:[#allocation5] sm:$0xff]
    %v84 = vld [vmem:[%s2] sm:$0x1]
    %v86 = vperm.slane %v84, 0
    %vm88 = vcmask 64512
    %v90 = vsel %vm88, %v82, 0
    %92 = vmatpush.msra.mxu0 0.0
    %93 = vmatpush.msra.mxu0 0.0
    %94 = vmatpush.msra.mxu0 0.0
    %95 = vmatpush.msra.mxu0 0.0
    %96 = vmatpush.msra.mxu0 0.0
    %97 = vmatpush.msra.mxu0 0.0
    %98 = vmatpush.msra.mxu0 0.0
    %99 = vmatpush.msra.mxu0 0.0
    %100 = vmatpush.msra.mxu0 0.0
    %101 = vmatpush.msra.mxu0 0.0
    %102 = vmatpush.msra.mxu0 0.0
    %103 = vmatpush.msra.mxu0 0.0
    %104 = vmatpush.msra.mxu0 0.0
    %105 = vmatpush.msra.mxu0 0.0
    %106 = vmatpush.msra.mxu0 0.0
    %107 = vmatpush.msra.mxu0 %v83
    %108 = vmatmul.f32.gmra.mxu0 %v90
    %v109 = vpop.f32.mrf.mxu0
    %v110 = vadd.f32 %v86, %v109
    %111 = vdwg.mxu0
    %vm112 = vcmp.ge.f32.partialorder %v110, 0.0
    %v113 = vmul.f32 %v110, 0.01
    %v114 = vsel %vm112, %v110, %v113
    %v115 = vld [vmem:[#allocation7] sm:$0xff]
    %v116 = vld [vmem:[%s4] sm:$0x1]
    %v118 = vperm.slane %v116, 0
    %v121 = vsel %vm88, %v114, 0
    %123 = vmatpush.msra.mxu0 0.0
    %124 = vmatpush.msra.mxu0 0.0
    %125 = vmatpush.msra.mxu0 0.0
    %126 = vmatpush.msra.mxu0 0.0
    %127 = vmatpush.msra.mxu0 0.0
    %128 = vmatpush.msra.mxu0 0.0
    %129 = vmatpush.msra.mxu0 0.0
    %130 = vmatpush.msra.mxu0 0.0
    %131 = vmatpush.msra.mxu0 0.0
    %132 = vmatpush.msra.mxu0 0.0
    %133 = vmatpush.msra.mxu0 0.0
    %134 = vmatpush.msra.mxu0 0.0
    %135 = vmatpush.msra.mxu0 0.0
    %136 = vmatpush.msra.mxu0 0.0
    %137 = vmatpush.msra.mxu0 0.0
    %138 = vmatpush.msra.mxu0 %v115
    %139 = vmatmul.f32.gmra.mxu0 %v121
    %v140 = vpop.f32.mrf.mxu0
    %v141 = vadd.f32 %v118, %v140
    %142 = vdwg.mxu0
    %vm143 = vcmp.ge.f32.partialorder %v141, 0.0
    %v144 = vmul.f32 %v141, 0.01
    %v145 = vsel %vm143, %v141, %v144
    %v146 = vadd.f32 %v145, %v114
    %v147 = vld [vmem:[#allocation8] sm:$0xff]
    %v148 = vld [vmem:[%s6] sm:$0x1]
    %v150 = vperm.slane %v148, 0
    %v153 = vsel %vm88, %v146, 0
    %155 = vmatpush.msra.mxu0 0.0
    %156 = vmatpush.msra.mxu0 0.0
    %157 = vmatpush.msra.mxu0 0.0
    %158 = vmatpush.msra.mxu0 0.0
    %159 = vmatpush.msra.mxu0 0.0
    %160 = vmatpush.msra.mxu0 0.0
    %161 = vmatpush.msra.mxu0 0.0
    %162 = vmatpush.msra.mxu0 0.0
    %163 = vmatpush.msra.mxu0 0.0
    %164 = vmatpush.msra.mxu0 0.0
    %165 = vmatpush.msra.mxu0 0.0
    %166 = vmatpush.msra.mxu0 0.0
    %167 = vmatpush.msra.mxu0 0.0
    %168 = vmatpush.msra.mxu0 0.0
    %169 = vmatpush.msra.mxu0 0.0
    %170 = vmatpush.msra.mxu0 %v147
    %171 = vmatmul.f32.gmra.mxu0 %v153
    %v172 = vpop.f32.mrf.mxu0
    %v173 = vadd.f32 %v150, %v172
    %174 = vdwg.mxu0
    %vm175 = vcmask 818176
    %176 = vst.msk [vmem:[#allocation10] sm:$0xff] %vm175, %v173
    // Predicated region
    $region46: #{tpu_custom_call.1} parent=1 // pred_check
      _
    $region47: #{tpu_custom_call.1} parent=1 // pred_check_branch
      %178 = sbr.rel (0) target = $region49
    $region48: #{tpu_custom_call.1} parent=1 // pred_region
      %180 = vsyncadd [#allocation4], 0
      %s182 = sshll.u32 [#allocation10], 4
      %s183 = int_to_ptr.vmem [resolvable:$true] %s182
      %s184 = sshll.u32 %s7, 4
      %s185 = int_to_ptr.hbm [resolvable:$true] %s184
      %187 = dma.vmem_to_hbm [thread:$0]  %s183, 128, %s185, [#allocation4]
    $region49: #{tpu_custom_call.1} parent=1 // pred_fallthru
      _
    // Predicated region
    $region50: #{tpu_custom_call.1} parent=1 // pred_check
      _
    $region51: #{tpu_custom_call.1} parent=1 // pred_check_branch
      %189 = sbr.rel (0) target = $region53
    $region52: #{tpu_custom_call.1} parent=1 // pred_region
      %191 = dma.done [#allocation4], 128
    $region53: #{tpu_custom_call.1} parent=1 // pred_fallthru
      _
    %192 = vsyncpa [#allocation3], 1
    %193 = vsyncpa [#allocation6], 1
    %194 = vsyncpa [#allocation9], 1
    %195 = vsyncpa [#allocation4], 1

</llo_original>
